<compile_context>
chip_gen: v7x
topology: tpu7x:2x2x1
jax: 0.10.0
libtpu: 0.0.40
codegen_flags: <defaults>
</compile_context>

<pallas_src>
import jax
import jax.numpy as jnp
from jax import lax
from jax.experimental import pallas as pl
from jax.experimental.pallas import tpu as pltpu


def make_convgru_cell(B, H, W, Cin, Ch, K):
    """Returns fwd(x, h, wr, wu, wo, br, bu, bo) -> new_state, NCHW / OIHW layouts."""
    P = K // 2
    Wp = W + 2 * P                       # padded width
    Hp = H + 2 * P                       # padded height
    Lp = (Hp + 1) * Wp                   # +1 extra zero row so every tap window fits
    N = H * Wp                           # output columns per image (W valid + 2P junk per row)
    CENTER = P * Wp + P                  # flat offset of the centre tap == offset of h itself
    offsets = tuple(dy * Wp + dx for dy in range(K) for dx in range(K))
    Cxp = -(-Cin // 8) * 8               # pad x conv channels to a sublane multiple
    KKX = K * K * Cxp
    KKH = K * K * Ch

    def kernel(xp_ref, hp_ref, wx_ref, whru_ref, who_ref, bru_ref, bo_ref, out_ref):
        xp = xp_ref[0]                                   # (Cxp, Lp) f32, zero-padded x image
        hp = hp_ref[0]                                   # (Ch,  Lp) f32, zero-padded h image

        def im2col(buf):                                 # (C, Lp) -> (K*K*C, N) bf16
            taps = [buf[:, t:t + N] for t in offsets]    # lane-window slices (XLU shifts)
            cols = jnp.stack(taps, axis=0)               # (K*K, C, N)
            return cols.reshape(-1, N).astype(jnp.bfloat16)

        x_cols = im2col(xp)                              # (KKX, N)
        h_cols = im2col(hp)                              # (KKH, N)

        # x-driven partial sums of all three gates, computed once (shared by both passes).
        px = jnp.dot(wx_ref[...], x_cols, preferred_element_type=jnp.float32)    # (3Ch, N)

        # pass 1: fused update/reset gates.
        ph = jnp.dot(whru_ref[...], h_cols, preferred_element_type=jnp.float32)  # (2Ch, N)
        gates = jax.nn.sigmoid(px[:2 * Ch] + ph + bru_ref[...])
        update = gates[:Ch]                              # (Ch, N)
        reset = gates[Ch:]                               # (Ch, N)

        h_c = hp[:, CENTER:CENTER + N]                   # h aligned with the output columns
        hr = h_c * reset                                 # zero at junk columns (h_c is zero there)

        # pass 2: candidate state from cat([x, h*reset]); re-embed hr as a padded image.
        hr_pad = jnp.concatenate(
            [jnp.zeros((Ch, CENTER), jnp.float32), hr,
             jnp.zeros((Ch, Lp - CENTER - N), jnp.float32)], axis=-1)             # (Ch, Lp)
        hr_cols = im2col(hr_pad)                         # (KKH, N)
        cand = jnp.tanh(px[2 * Ch:]
                        + jnp.dot(who_ref[...], hr_cols,
                                  preferred_element_type=jnp.float32)
                        + bo_ref[...])                   # (Ch, N)

        # GRU blend (f32); junk columns compute garbage that the wrapper slices away.
        out_ref[0] = h_c * (1.0 - update) + cand * update

    @jax.jit
    def fwd(x, h, wr, wu, wo, br, bu, bo):
        # x: (B, Cin, H, W); h: (B, Ch, H, W); w*: (Ch, Cin+Ch, K, K) OIHW; b*: (Ch,)
        f32, bf16 = jnp.float32, jnp.bfloat16

        def prep(w_sub):                 # (Ch, C, K, K) -> (Ch, K*K*C), (dy, dx, c) order
            return jnp.transpose(w_sub, (0, 2, 3, 1)).reshape(Ch, -1)

        cpad = ((0, 0), (0, Cxp - Cin), (0, 0), (0, 0))
        wx = jnp.concatenate(
            [prep(jnp.pad(w[:, :Cin], cpad)) for w in (wu, wr, wo)],
            axis=0).astype(bf16)                                                  # (3Ch, KKX)
        wh_ru = jnp.concatenate(
            [prep(wu[:, Cin:]), prep(wr[:, Cin:])], axis=0).astype(bf16)          # (2Ch, KKH)
        wh_o = prep(wo[:, Cin:]).astype(bf16)                                     # (Ch,  KKH)
        b_ru = jnp.concatenate([bu, br]).reshape(2 * Ch, 1).astype(f32)
        b_o = bo.reshape(Ch, 1).astype(f32)

        def pad_flat(t):                 # (B, C, H, W) -> (B, C, Lp) zero-padded, row-major flat
            t = jnp.pad(t, ((0, 0), (0, 0), (P, P + 1), (P, P)))
            return t.reshape(t.shape[0], t.shape[1], Lp).astype(f32)

        xp = pad_flat(jnp.pad(x, cpad))  # (B, Cxp, Lp)
        hp = pad_flat(h)                 # (B, Ch,  Lp)

        out = pl.pallas_call(
            kernel,
            out_shape=jax.ShapeDtypeStruct((B, Ch, N), f32),
            grid=(B,),
            in_specs=[
                pl.BlockSpec((1, Cxp, Lp), lambda b: (b, 0, 0)),
                pl.BlockSpec((1, Ch, Lp), lambda b: (b, 0, 0)),
                pl.BlockSpec((3 * Ch, KKX), lambda b: (0, 0)),
                pl.BlockSpec((2 * Ch, KKH), lambda b: (0, 0)),
                pl.BlockSpec((Ch, KKH), lambda b: (0, 0)),
                pl.BlockSpec((2 * Ch, 1), lambda b: (0, 0)),
                pl.BlockSpec((Ch, 1), lambda b: (0, 0)),
            ],
            out_specs=pl.BlockSpec((1, Ch, N), lambda b: (b, 0, 0)),
            compiler_params=pltpu.CompilerParams(
                dimension_semantics=("parallel",)),
        )(xp, hp, wx, wh_ru, wh_o, b_ru, b_o)

        # (B, Ch, H*Wp) -> (B, Ch, H, Wp) -> drop the 2P junk columns -> NCHW.
        return out.reshape(B, Ch, H, Wp)[:, :, :, :W]

    return fwd


def reference_forward(x, h, wr, wu, wo, br, bu, bo):
    """Pure-JAX f32 reference, NCHW / OIHW (mirrors the PyTorch module)."""
    def conv(inp, w, b):
        y = lax.conv_general_dilated(
            inp, w, window_strides=(1, 1), padding="SAME",
            dimension_numbers=("NCHW", "OIHW", "NCHW"))
        return y + b.reshape(1, -1, 1, 1)

    stacked = jnp.concatenate([x, h], axis=1)
    update = jax.nn.sigmoid(conv(stacked, wu, bu))
    reset = jax.nn.sigmoid(conv(stacked, wr, br))
    out_in = jnp.tanh(conv(jnp.concatenate([x, h * reset], axis=1), wo, bo))
    return h * (1.0 - update) + out_in * update


if __name__ == "__main__":
    # ConvGRUCell(input_size=4, hidden_size=8, kernel_size=3)
    B, Cin, Ch, H, W, K = 2, 4, 8, 16, 16, 3
    Ct = Cin + Ch

    key = jax.random.PRNGKey(0)
    kx, kh, k1, k2, k3 = jax.random.split(key, 5)

    # TODO(synk): PyTorch uses init.orthogonal; deterministic Gaussian stands in here.
    wr = 0.1 * jax.random.normal(k1, (Ch, Ct, K, K), jnp.float32)
    wu = 0.1 * jax.random.normal(k2, (Ch, Ct, K, K), jnp.float32)
    wo = 0.1 * jax.random.normal(k3, (Ch, Ct, K, K), jnp.float32)
    br = jnp.zeros((Ch,), jnp.float32)   # init.constant(bias, 0.)
    bu = jnp.zeros((Ch,), jnp.float32)
    bo = jnp.zeros((Ch,), jnp.float32)

    # Inputs in PyTorch-native NCHW.
    x = jax.random.normal(kx, (B, Cin, H, W), jnp.float32)
    h = jax.random.normal(kh, (B, Ch, H, W), jnp.float32)   # prev_state

    fwd = make_convgru_cell(B, H, W, Cin, Ch, K)
    new_state = jax.block_until_ready(fwd(x, h, wr, wu, wo, br, bu, bo))

    ref = reference_forward(x, h, wr, wu, wo, br, bu, bo)
    assert new_state.shape == (B, Ch, H, W)
    # bf16 MXU operands (f32 accumulate) -> loosen tolerance vs. the f32 reference.
    assert jnp.allclose(new_state, ref, atol=2e-2, rtol=2e-2), \
        float(jnp.max(jnp.abs(new_state - ref)))

    print("KERNEL_OK")
</pallas_src>

<mosaic_0001>
module attributes {stable_mosaic.version = 11 : i64} {
  func.func @kernel(%arg0: i32, %arg1: memref<1x8x342xf32, #tpu.memory_space<vmem>>, %arg2: memref<1x8x342xf32, #tpu.memory_space<vmem>>, %arg3: memref<24x72xbf16, #tpu.memory_space<vmem>>, %arg4: memref<16x72xbf16, #tpu.memory_space<vmem>>, %arg5: memref<8x72xbf16, #tpu.memory_space<vmem>>, %arg6: memref<16x1xf32, #tpu.memory_space<vmem>>, %arg7: memref<8x1xf32, #tpu.memory_space<vmem>>, %arg8: memref<1x8x288xf32, #tpu.memory_space<vmem>>) attributes {dimension_semantics = [#tpu.dimension_semantics<parallel>], iteration_bounds = array<i64: 2>, scalar_prefetch = 0 : i64, scratch_operands = 0 : i64, tpu.core_type = #tpu.core_type<tc>, window_params = [{transform_indices = @transform_0, window_bounds = array<i64: 1, 8, 342>}, {transform_indices = @transform_1, window_bounds = array<i64: 1, 8, 342>}, {pipeline_mode = #tpu.pipeline_mode<synchronous>, transform_indices = @transform_2, window_bounds = array<i64: 24, 72>}, {pipeline_mode = #tpu.pipeline_mode<synchronous>, transform_indices = @transform_3, window_bounds = array<i64: 16, 72>}, {pipeline_mode = #tpu.pipeline_mode<synchronous>, transform_indices = @transform_4, window_bounds = array<i64: 8, 72>}, {pipeline_mode = #tpu.pipeline_mode<synchronous>, transform_indices = @transform_5, window_bounds = array<i64: 16, 1>}, {pipeline_mode = #tpu.pipeline_mode<synchronous>, transform_indices = @transform_6, window_bounds = array<i64: 8, 1>}, {transform_indices = @transform_7, window_bounds = array<i64: 1, 8, 288>}]} {
    %c0 = arith.constant 0 : index
    %c0_0 = arith.constant 0 : index
    %c0_1 = arith.constant 0 : index
    %0 = vector.load %arg1[%c0, %c0_0, %c0_1] : memref<1x8x342xf32, #tpu.memory_space<vmem>>, vector<1x8x342xf32>
    %1 = vector.shape_cast %0 : vector<1x8x342xf32> to vector<8x342xf32>
    %c0_2 = arith.constant 0 : index
    %c0_3 = arith.constant 0 : index
    %c0_4 = arith.constant 0 : index
    %2 = vector.load %arg2[%c0_2, %c0_3, %c0_4] : memref<1x8x342xf32, #tpu.memory_space<vmem>>, vector<1x8x342xf32>
    %3 = vector.shape_cast %2 : vector<1x8x342xf32> to vector<8x342xf32>
    %4 = vector.extract_strided_slice %1 {offsets = [0, 0], sizes = [8, 288], strides = [1, 1]} : vector<8x342xf32> to vector<8x288xf32>
    %5 = vector.extract_strided_slice %1 {offsets = [0, 1], sizes = [8, 288], strides = [1, 1]} : vector<8x342xf32> to vector<8x288xf32>
    %6 = vector.extract_strided_slice %1 {offsets = [0, 2], sizes = [8, 288], strides = [1, 1]} : vector<8x342xf32> to vector<8x288xf32>
    %7 = vector.extract_strided_slice %1 {offsets = [0, 18], sizes = [8, 288], strides = [1, 1]} : vector<8x342xf32> to vector<8x288xf32>
    %8 = vector.extract_strided_slice %1 {offsets = [0, 19], sizes = [8, 288], strides = [1, 1]} : vector<8x342xf32> to vector<8x288xf32>
    %9 = vector.extract_strided_slice %1 {offsets = [0, 20], sizes = [8, 288], strides = [1, 1]} : vector<8x342xf32> to vector<8x288xf32>
    %10 = vector.extract_strided_slice %1 {offsets = [0, 36], sizes = [8, 288], strides = [1, 1]} : vector<8x342xf32> to vector<8x288xf32>
    %11 = vector.extract_strided_slice %1 {offsets = [0, 37], sizes = [8, 288], strides = [1, 1]} : vector<8x342xf32> to vector<8x288xf32>
    %12 = vector.extract_strided_slice %1 {offsets = [0, 38], sizes = [8, 288], strides = [1, 1]} : vector<8x342xf32> to vector<8x288xf32>
    %13 = vector.shape_cast %4 : vector<8x288xf32> to vector<1x8x288xf32>
    %14 = vector.shape_cast %5 : vector<8x288xf32> to vector<1x8x288xf32>
    %15 = vector.shape_cast %6 : vector<8x288xf32> to vector<1x8x288xf32>
    %16 = vector.shape_cast %7 : vector<8x288xf32> to vector<1x8x288xf32>
    %17 = vector.shape_cast %8 : vector<8x288xf32> to vector<1x8x288xf32>
    %18 = vector.shape_cast %9 : vector<8x288xf32> to vector<1x8x288xf32>
    %19 = vector.shape_cast %10 : vector<8x288xf32> to vector<1x8x288xf32>
    %20 = vector.shape_cast %11 : vector<8x288xf32> to vector<1x8x288xf32>
    %21 = vector.shape_cast %12 : vector<8x288xf32> to vector<1x8x288xf32>
    %22 = tpu.concatenate %13, %14, %15, %16, %17, %18, %19, %20, %21 in 0 : vector<1x8x288xf32>, vector<1x8x288xf32>, vector<1x8x288xf32>, vector<1x8x288xf32>, vector<1x8x288xf32>, vector<1x8x288xf32>, vector<1x8x288xf32>, vector<1x8x288xf32>, vector<1x8x288xf32> -> vector<9x8x288xf32>
    %23 = vector.shape_cast %22 : vector<9x8x288xf32> to vector<72x288xf32>
    %24 = arith.truncf %23 : vector<72x288xf32> to vector<72x288xbf16>
    %25 = vector.extract_strided_slice %3 {offsets = [0, 0], sizes = [8, 288], strides = [1, 1]} : vector<8x342xf32> to vector<8x288xf32>
    %26 = vector.extract_strided_slice %3 {offsets = [0, 1], sizes = [8, 288], strides = [1, 1]} : vector<8x342xf32> to vector<8x288xf32>
    %27 = vector.extract_strided_slice %3 {offsets = [0, 2], sizes = [8, 288], strides = [1, 1]} : vector<8x342xf32> to vector<8x288xf32>
    %28 = vector.extract_strided_slice %3 {offsets = [0, 18], sizes = [8, 288], strides = [1, 1]} : vector<8x342xf32> to vector<8x288xf32>
    %29 = vector.extract_strided_slice %3 {offsets = [0, 19], sizes = [8, 288], strides = [1, 1]} : vector<8x342xf32> to vector<8x288xf32>
    %30 = vector.extract_strided_slice %3 {offsets = [0, 20], sizes = [8, 288], strides = [1, 1]} : vector<8x342xf32> to vector<8x288xf32>
    %31 = vector.extract_strided_slice %3 {offsets = [0, 36], sizes = [8, 288], strides = [1, 1]} : vector<8x342xf32> to vector<8x288xf32>
    %32 = vector.extract_strided_slice %3 {offsets = [0, 37], sizes = [8, 288], strides = [1, 1]} : vector<8x342xf32> to vector<8x288xf32>
    %33 = vector.extract_strided_slice %3 {offsets = [0, 38], sizes = [8, 288], strides = [1, 1]} : vector<8x342xf32> to vector<8x288xf32>
    %34 = vector.shape_cast %25 : vector<8x288xf32> to vector<1x8x288xf32>
    %35 = vector.shape_cast %26 : vector<8x288xf32> to vector<1x8x288xf32>
    %36 = vector.shape_cast %27 : vector<8x288xf32> to vector<1x8x288xf32>
    %37 = vector.shape_cast %28 : vector<8x288xf32> to vector<1x8x288xf32>
    %38 = vector.shape_cast %29 : vector<8x288xf32> to vector<1x8x288xf32>
    %39 = vector.shape_cast %30 : vector<8x288xf32> to vector<1x8x288xf32>
    %40 = vector.shape_cast %31 : vector<8x288xf32> to vector<1x8x288xf32>
    %41 = vector.shape_cast %32 : vector<8x288xf32> to vector<1x8x288xf32>
    %42 = vector.shape_cast %33 : vector<8x288xf32> to vector<1x8x288xf32>
    %43 = tpu.concatenate %34, %35, %36, %37, %38, %39, %40, %41, %42 in 0 : vector<1x8x288xf32>, vector<1x8x288xf32>, vector<1x8x288xf32>, vector<1x8x288xf32>, vector<1x8x288xf32>, vector<1x8x288xf32>, vector<1x8x288xf32>, vector<1x8x288xf32>, vector<1x8x288xf32> -> vector<9x8x288xf32>
    %44 = vector.shape_cast %43 : vector<9x8x288xf32> to vector<72x288xf32>
    %45 = arith.truncf %44 : vector<72x288xf32> to vector<72x288xbf16>
    %c0_5 = arith.constant 0 : index
    %c0_6 = arith.constant 0 : index
    %46 = vector.load %arg3[%c0_5, %c0_6] : memref<24x72xbf16, #tpu.memory_space<vmem>>, vector<24x72xbf16>
    %cst = arith.constant dense<0.000000e+00> : vector<24x288xf32>
    %47 = tpu.matmul %46, %24, %cst {dimension_numbers = #tpu.dot_dimension_numbers<[1], [0], [0], [1], [0, 0, 1, 1], [], []>} : vector<24x72xbf16>, vector<72x288xbf16>, vector<24x288xf32> -> vector<24x288xf32>
    %c0_7 = arith.constant 0 : index
    %c0_8 = arith.constant 0 : index
    %48 = vector.load %arg4[%c0_7, %c0_8] : memref<16x72xbf16, #tpu.memory_space<vmem>>, vector<16x72xbf16>
    %cst_9 = arith.constant dense<0.000000e+00> : vector<16x288xf32>
    %49 = tpu.matmul %48, %45, %cst_9 {dimension_numbers = #tpu.dot_dimension_numbers<[1], [0], [0], [1], [0, 0, 1, 1], [], []>} : vector<16x72xbf16>, vector<72x288xbf16>, vector<16x288xf32> -> vector<16x288xf32>
    %50 = vector.extract_strided_slice %47 {offsets = [0, 0], sizes = [16, 288], strides = [1, 1]} : vector<24x288xf32> to vector<16x288xf32>
    %51 = arith.addf %50, %49 : vector<16x288xf32>
    %c0_10 = arith.constant 0 : index
    %c0_11 = arith.constant 0 : index
    %52 = vector.load %arg6[%c0_10, %c0_11] : memref<16x1xf32, #tpu.memory_space<vmem>>, vector<16x1xf32>
    %53 = vector.broadcast %52 : vector<16x1xf32> to vector<16x288xf32>
    %54 = arith.addf %51, %53 : vector<16x288xf32>
    %55 = arith.negf %54 : vector<16x288xf32>
    %56 = math.exp %55 : vector<16x288xf32>
    %cst_12 = arith.constant 1.000000e+00 : f32
    %57 = vector.broadcast %cst_12 : f32 to vector<16x288xf32>
    %58 = arith.addf %57, %56 : vector<16x288xf32>
    %59 = arith.divf %57, %58 : vector<16x288xf32>
    %60 = vector.extract_strided_slice %59 {offsets = [0, 0], sizes = [8, 288], strides = [1, 1]} : vector<16x288xf32> to vector<8x288xf32>
    %61 = vector.extract_strided_slice %59 {offsets = [8, 0], sizes = [8, 288], strides = [1, 1]} : vector<16x288xf32> to vector<8x288xf32>
    %62 = vector.extract_strided_slice %3 {offsets = [0, 19], sizes = [8, 288], strides = [1, 1]} : vector<8x342xf32> to vector<8x288xf32>
    %63 = arith.mulf %62, %61 : vector<8x288xf32>
    %cst_13 = arith.constant 0.000000e+00 : f32
    %64 = vector.broadcast %cst_13 : f32 to vector<8x19xf32>
    %cst_14 = arith.constant 0.000000e+00 : f32
    %65 = vector.broadcast %cst_14 : f32 to vector<8x35xf32>
    %66 = tpu.concatenate %64, %63, %65 in 1 : vector<8x19xf32>, vector<8x288xf32>, vector<8x35xf32> -> vector<8x342xf32>
    %67 = vector.extract_strided_slice %66 {offsets = [0, 0], sizes = [8, 288], strides = [1, 1]} : vector<8x342xf32> to vector<8x288xf32>
    %68 = vector.extract_strided_slice %66 {offsets = [0, 1], sizes = [8, 288], strides = [1, 1]} : vector<8x342xf32> to vector<8x288xf32>
    %69 = vector.extract_strided_slice %66 {offsets = [0, 2], sizes = [8, 288], strides = [1, 1]} : vector<8x342xf32> to vector<8x288xf32>
    %70 = vector.extract_strided_slice %66 {offsets = [0, 18], sizes = [8, 288], strides = [1, 1]} : vector<8x342xf32> to vector<8x288xf32>
    %71 = vector.extract_strided_slice %66 {offsets = [0, 19], sizes = [8, 288], strides = [1, 1]} : vector<8x342xf32> to vector<8x288xf32>
    %72 = vector.extract_strided_slice %66 {offsets = [0, 20], sizes = [8, 288], strides = [1, 1]} : vector<8x342xf32> to vector<8x288xf32>
    %73 = vector.extract_strided_slice %66 {offsets = [0, 36], sizes = [8, 288], strides = [1, 1]} : vector<8x342xf32> to vector<8x288xf32>
    %74 = vector.extract_strided_slice %66 {offsets = [0, 37], sizes = [8, 288], strides = [1, 1]} : vector<8x342xf32> to vector<8x288xf32>
    %75 = vector.extract_strided_slice %66 {offsets = [0, 38], sizes = [8, 288], strides = [1, 1]} : vector<8x342xf32> to vector<8x288xf32>
    %76 = vector.shape_cast %67 : vector<8x288xf32> to vector<1x8x288xf32>
    %77 = vector.shape_cast %68 : vector<8x288xf32> to vector<1x8x288xf32>
    %78 = vector.shape_cast %69 : vector<8x288xf32> to vector<1x8x288xf32>
    %79 = vector.shape_cast %70 : vector<8x288xf32> to vector<1x8x288xf32>
    %80 = vector.shape_cast %71 : vector<8x288xf32> to vector<1x8x288xf32>
    %81 = vector.shape_cast %72 : vector<8x288xf32> to vector<1x8x288xf32>
    %82 = vector.shape_cast %73 : vector<8x288xf32> to vector<1x8x288xf32>
    %83 = vector.shape_cast %74 : vector<8x288xf32> to vector<1x8x288xf32>
    %84 = vector.shape_cast %75 : vector<8x288xf32> to vector<1x8x288xf32>
    %85 = tpu.concatenate %76, %77, %78, %79, %80, %81, %82, %83, %84 in 0 : vector<1x8x288xf32>, vector<1x8x288xf32>, vector<1x8x288xf32>, vector<1x8x288xf32>, vector<1x8x288xf32>, vector<1x8x288xf32>, vector<1x8x288xf32>, vector<1x8x288xf32>, vector<1x8x288xf32> -> vector<9x8x288xf32>
    %86 = vector.shape_cast %85 : vector<9x8x288xf32> to vector<72x288xf32>
    %87 = arith.truncf %86 : vector<72x288xf32> to vector<72x288xbf16>
    %88 = vector.extract_strided_slice %47 {offsets = [16, 0], sizes = [8, 288], strides = [1, 1]} : vector<24x288xf32> to vector<8x288xf32>
    %c0_15 = arith.constant 0 : index
    %c0_16 = arith.constant 0 : index
    %89 = vector.load %arg5[%c0_15, %c0_16] : memref<8x72xbf16, #tpu.memory_space<vmem>>, vector<8x72xbf16>
    %cst_17 = arith.constant dense<0.000000e+00> : vector<8x288xf32>
    %90 = tpu.matmul %89, %87, %cst_17 {dimension_numbers = #tpu.dot_dimension_numbers<[1], [0], [0], [1], [0, 0, 1, 1], [], []>} : vector<8x72xbf16>, vector<72x288xbf16>, vector<8x288xf32> -> vector<8x288xf32>
    %91 = arith.addf %88, %90 : vector<8x288xf32>
    %c0_18 = arith.constant 0 : index
    %c0_19 = arith.constant 0 : index
    %92 = vector.load %arg7[%c0_18, %c0_19] : memref<8x1xf32, #tpu.memory_space<vmem>>, vector<8x1xf32>
    %93 = vector.broadcast %92 : vector<8x1xf32> to vector<8x288xf32>
    %94 = arith.addf %91, %93 : vector<8x288xf32>
    %95 = math.tanh %94 : vector<8x288xf32>
    %cst_20 = arith.constant 1.000000e+00 : f32
    %96 = vector.broadcast %cst_20 : f32 to vector<8x288xf32>
    %97 = arith.subf %96, %60 : vector<8x288xf32>
    %98 = arith.mulf %62, %97 : vector<8x288xf32>
    %99 = arith.mulf %95, %60 : vector<8x288xf32>
    %100 = arith.addf %98, %99 : vector<8x288xf32>
    %c0_21 = arith.constant 0 : index
    %c0_22 = arith.constant 0 : index
    %c0_23 = arith.constant 0 : index
    %101 = vector.load %arg8[%c0_21, %c0_22, %c0_23] : memref<1x8x288xf32, #tpu.memory_space<vmem>>, vector<1x8x288xf32>
    %102 = vector.shape_cast %101 : vector<1x8x288xf32> to vector<8x288xf32>
    %103 = vector.shape_cast %100 : vector<8x288xf32> to vector<1x8x288xf32>
    tpu.vector_store %arg8[%c0_21, %c0_22, %c0_23], %103 {strides = array<i32>} : memref<1x8x288xf32, #tpu.memory_space<vmem>>, vector<1x8x288xf32>,
    return
  }
  func.func @transform_0(%arg0: i32) -> (i32, i32, i32) {
    %c0_i32 = arith.constant 0 : i32
    %c0_i32_0 = arith.constant 0 : i32
    %c0_i32_1 = arith.constant 0 : i32
    return %arg0, %c0_i32, %c0_i32_0 : i32, i32, i32
  }
  func.func @transform_1(%arg0: i32) -> (i32, i32, i32) {
    %c0_i32 = arith.constant 0 : i32
    %c0_i32_0 = arith.constant 0 : i32
    %c0_i32_1 = arith.constant 0 : i32
    return %arg0, %c0_i32, %c0_i32_0 : i32, i32, i32
  }
  func.func @transform_2(%arg0: i32) -> (i32, i32) {
    %c0_i32 = arith.constant 0 : i32
    %c0_i32_0 = arith.constant 0 : i32
    %c0_i32_1 = arith.constant 0 : i32
    return %c0_i32, %c0_i32_0 : i32, i32
  }
  func.func @transform_3(%arg0: i32) -> (i32, i32) {
    %c0_i32 = arith.constant 0 : i32
    %c0_i32_0 = arith.constant 0 : i32
    %c0_i32_1 = arith.constant 0 : i32
    return %c0_i32, %c0_i32_0 : i32, i32
  }
  func.func @transform_4(%arg0: i32) -> (i32, i32) {
    %c0_i32 = arith.constant 0 : i32
    %c0_i32_0 = arith.constant 0 : i32
    %c0_i32_1 = arith.constant 0 : i32
    return %c0_i32, %c0_i32_0 : i32, i32
  }
  func.func @transform_5(%arg0: i32) -> (i32, i32) {
    %c0_i32 = arith.constant 0 : i32
    %c0_i32_0 = arith.constant 0 : i32
    %c0_i32_1 = arith.constant 0 : i32
    return %c0_i32, %c0_i32_0 : i32, i32
  }
  func.func @transform_6(%arg0: i32) -> (i32, i32) {
    %c0_i32 = arith.constant 0 : i32
    %c0_i32_0 = arith.constant 0 : i32
    %c0_i32_1 = arith.constant 0 : i32
    return %c0_i32, %c0_i32_0 : i32, i32
  }
  func.func @transform_7(%arg0: i32) -> (i32, i32, i32) {
    %c0_i32 = arith.constant 0 : i32
    %c0_i32_0 = arith.constant 0 : i32
    %c0_i32_1 = arith.constant 0 : i32
    return %arg0, %c0_i32, %c0_i32_0 : i32, i32, i32
  }
}

</mosaic_0001>

<llo_original>
// kernel: fwd.1
$region0: #{fwd.1}
  #allocation0 [shape = 'u32[]', space=smem, size = 0x4, offset = 0x4, fixed_abs, tag = 'smem constant byte address 0x4 - core index']
  #allocation1 [shape = 'u32[144,128]{1,0:T(1,128)}', space=vmem, size = 0x12000, scoped, tag = 'internal scratch']
  %s0 = inlined_call_operand.vmem [shape: f32[2,8,342], index: 0, kind: input, shape index: {}]
  %s1 = inlined_call_operand.vmem [shape: f32[2,8,342], index: 1, kind: input, shape index: {}]
  %s2 = inlined_call_operand.vmem [shape: bf16[24,72], index: 2, kind: input, shape index: {}]
  %s3 = inlined_call_operand.vmem [shape: bf16[16,72], index: 3, kind: input, shape index: {}]
  %s4 = inlined_call_operand.vmem [shape: bf16[8,72], index: 4, kind: input, shape index: {}]
  %s5 = inlined_call_operand.vmem [shape: f32[16,1], index: 5, kind: input, shape index: {}]
  %s6 = inlined_call_operand.vmem [shape: f32[8,1], index: 6, kind: input, shape index: {}]
  %s7 = inlined_call_operand.vmem [shape: f32[2,8,288], index: 7, kind: output, shape index: {}]
  %s8 = sld [smem:[#allocation0]]
  $region61: #{fwd.1} parent=0
    _
  %s10 = ssub.s32 1, %s8
  %s11 = scalar_select 0, %s10, %s8
  loop: start=0, step=1, limit=4
  $region2: #{fwd.1} parent=0 // loop_pre_header
    _
  $region3: #{fwd.1} parent=0 // loop_header
    %s13 = sphi 0, %s17
    %p14 = scmp.ge.s32.totalorder %s13, 4
    %s23 = sphi 0, %s25
    %s26 = sphi 0, %s23
    %s27 = sphi 0, %s26
    %s43 = sphi 0, %s27
    %s49 = sphi 0, %s51
    %s52 = sphi 0, %s49
    %s53 = sphi 0, %s52
    %s69 = sphi 0, %s53
    %s73 = sphi 0, %s73
    %s75 = sphi 0, %s73
    %s76 = sphi 0, %s75
    %s90 = sphi 0, %s76
    %s94 = sphi 0, %s94
    %s96 = sphi 0, %s94
    %s97 = sphi 0, %s96
    %s111 = sphi 0, %s97
    %s115 = sphi 0, %s115
    %s117 = sphi 0, %s115
    %s118 = sphi 0, %s117
    %s132 = sphi 0, %s118
    %s136 = sphi 0, %s136
    %s138 = sphi 0, %s136
    %s139 = sphi 0, %s138
    %s153 = sphi 0, %s139
    %s157 = sphi 0, %s157
    %s159 = sphi 0, %s157
    %s160 = sphi 0, %s159
    %s174 = sphi 0, %s160
    %s180 = sphi 0, %s182
    %s183 = sphi 0, %s180
    %s184 = sphi 0, %s183
    %s200 = sphi 0, %s184
  $region4: #{fwd.1} parent=0 // loop_header_branch
    %16 = sbr.rel (%p14) target = $region8
  $region5: #{fwd.1} parent=0 // loop_body
    %s18 = ssub.s32 %s13, 1
    %s19 = ssub.s32 %s13, 2
    %s20 = sadd.s32 %s13, 1
    %s21 = ssub.s32 %s13, %s20
    %p22 = scmp.eq.s32.totalorder %s21, 0
    %s24 = sadd.s32 %s23, 1
    %s25 = scalar_select %p22, %s23, %s24
    %p28 = pneg %p22
    %p29 = scmp.eq.s32.totalorder %s13, 1
    %p30 = por %p28, %p29
    %p31 = scmp.ne.s32.totalorder %s23, %s26
    %p32 = scmp.eq.s32.totalorder %s13, 0
    %p33 = por %p31, %p32
    %p34 = scmp.ne.s32.totalorder %s23, %s26
    %p35 = scmp.eq.s32.totalorder %s18, 1
    %p36 = por %p34, %p35
    %p37 = scmp.ne.s32.totalorder %s26, %s27
    %p38 = scmp.eq.s32.totalorder %s18, 0
    %p39 = por %p37, %p38
    %p40 = scmp.ne.s32.totalorder %s26, %s27
    %p41 = scmp.eq.s32.totalorder %s19, 1
    %p42 = por %p40, %p41
    %p44 = scmp.ne.s32.totalorder %s27, %s43
    %p45 = scmp.eq.s32.totalorder %s19, 0
    %p46 = por %p44, %p45
    %s47 = ssub.s32 %s13, %s20
    %p48 = scmp.eq.s32.totalorder %s47, 0
    %s50 = sadd.s32 %s49, 1
    %s51 = scalar_select %p48, %s49, %s50
    %p54 = pneg %p48
    %p55 = scmp.eq.s32.totalorder %s13, 1
    %p56 = por %p54, %p55
    %p57 = scmp.ne.s32.totalorder %s49, %s52
    %p58 = scmp.eq.s32.totalorder %s13, 0
    %p59 = por %p57, %p58
    %p60 = scmp.ne.s32.totalorder %s49, %s52
    %p61 = scmp.eq.s32.totalorder %s18, 1
    %p62 = por %p60, %p61
    %p63 = scmp.ne.s32.totalorder %s52, %s53
    %p64 = scmp.eq.s32.totalorder %s18, 0
    %p65 = por %p63, %p64
    %p66 = scmp.ne.s32.totalorder %s52, %s53
    %p67 = scmp.eq.s32.totalorder %s19, 1
    %p68 = por %p66, %p67
    %p70 = scmp.ne.s32.totalorder %s53, %s69
    %p71 = scmp.eq.s32.totalorder %s19, 0
    %p72 = por %p70, %p71
    %s74 = sadd.s32 %s73, 1
    %p77 = scmp.eq.s32.totalorder %s13, 1
    %p78 = scmp.ne.s32.totalorder %s73, %s75
    %p79 = scmp.eq.s32.totalorder %s13, 0
    %p80 = por %p78, %p79
    %p81 = scmp.ne.s32.totalorder %s73, %s75
    %p82 = scmp.eq.s32.totalorder %s18, 1
    %p83 = por %p81, %p82
    %p84 = scmp.ne.s32.totalorder %s75, %s76
    %p85 = scmp.eq.s32.totalorder %s18, 0
    %p86 = por %p84, %p85
    %p87 = scmp.ne.s32.totalorder %s75, %s76
    %p88 = scmp.eq.s32.totalorder %s19, 1
    %p89 = por %p87, %p88
    %p91 = scmp.ne.s32.totalorder %s76, %s90
    %p92 = scmp.eq.s32.totalorder %s19, 0
    %p93 = por %p91, %p92
    %s95 = sadd.s32 %s94, 1
    %p98 = scmp.eq.s32.totalorder %s13, 1
    %p99 = scmp.ne.s32.totalorder %s94, %s96
    %p100 = scmp.eq.s32.totalorder %s13, 0
    %p101 = por %p99, %p100
    %p102 = scmp.ne.s32.totalorder %s94, %s96
    %p103 = scmp.eq.s32.totalorder %s18, 1
    %p104 = por %p102, %p103
    %p105 = scmp.ne.s32.totalorder %s96, %s97
    %p106 = scmp.eq.s32.totalorder %s18, 0
    %p107 = por %p105, %p106
    %p108 = scmp.ne.s32.totalorder %s96, %s97
    %p109 = scmp.eq.s32.totalorder %s19, 1
    %p110 = por %p108, %p109
    %p112 = scmp.ne.s32.totalorder %s97, %s111
    %p113 = scmp.eq.s32.totalorder %s19, 0
    %p114 = por %p112, %p113
    %s116 = sadd.s32 %s115, 1
    %p119 = scmp.eq.s32.totalorder %s13, 1
    %p120 = scmp.ne.s32.totalorder %s115, %s117
    %p121 = scmp.eq.s32.totalorder %s13, 0
    %p122 = por %p120, %p121
    %p123 = scmp.ne.s32.totalorder %s115, %s117
    %p124 = scmp.eq.s32.totalorder %s18, 1
    %p125 = por %p123, %p124
    %p126 = scmp.ne.s32.totalorder %s117, %s118
    %p127 = scmp.eq.s32.totalorder %s18, 0
    %p128 = por %p126, %p127
    %p129 = scmp.ne.s32.totalorder %s117, %s118
    %p130 = scmp.eq.s32.totalorder %s19, 1
    %p131 = por %p129, %p130
    %p133 = scmp.ne.s32.totalorder %s118, %s132
    %p134 = scmp.eq.s32.totalorder %s19, 0
    %p135 = por %p133, %p134
    %s137 = sadd.s32 %s136, 1
    %p140 = scmp.eq.s32.totalorder %s13, 1
    %p141 = scmp.ne.s32.totalorder %s136, %s138
    %p142 = scmp.eq.s32.totalorder %s13, 0
    %p143 = por %p141, %p142
    %p144 = scmp.ne.s32.totalorder %s136, %s138
    %p145 = scmp.eq.s32.totalorder %s18, 1
    %p146 = por %p144, %p145
    %p147 = scmp.ne.s32.totalorder %s138, %s139
    %p148 = scmp.eq.s32.totalorder %s18, 0
    %p149 = por %p147, %p148
    %p150 = scmp.ne.s32.totalorder %s138, %s139
    %p151 = scmp.eq.s32.totalorder %s19, 1
    %p152 = por %p150, %p151
    %p154 = scmp.ne.s32.totalorder %s139, %s153
    %p155 = scmp.eq.s32.totalorder %s19, 0
    %p156 = por %p154, %p155
    %s158 = sadd.s32 %s157, 1
    %p161 = scmp.eq.s32.totalorder %s13, 1
    %p162 = scmp.ne.s32.totalorder %s157, %s159
    %p163 = scmp.eq.s32.totalorder %s13, 0
    %p164 = por %p162, %p163
    %p165 = scmp.ne.s32.totalorder %s157, %s159
    %p166 = scmp.eq.s32.totalorder %s18, 1
    %p167 = por %p165, %p166
    %p168 = scmp.ne.s32.totalorder %s159, %s160
    %p169 = scmp.eq.s32.totalorder %s18, 0
    %p170 = por %p168, %p169
    %p171 = scmp.ne.s32.totalorder %s159, %s160
    %p172 = scmp.eq.s32.totalorder %s19, 1
    %p173 = por %p171, %p172
    %p175 = scmp.ne.s32.totalorder %s160, %s174
    %p176 = scmp.eq.s32.totalorder %s19, 0
    %p177 = por %p175, %p176
    %s178 = ssub.s32 %s13, %s20
    %p179 = scmp.eq.s32.totalorder %s178, 0
    %s181 = sadd.s32 %s180, 1
    %s182 = scalar_select %p179, %s180, %s181
    %p185 = pneg %p179
    %p186 = scmp.eq.s32.totalorder %s13, 1
    %p187 = por %p185, %p186
    %p188 = scmp.ne.s32.totalorder %s180, %s183
    %p189 = scmp.eq.s32.totalorder %s13, 0
    %p190 = por %p188, %p189
    %p191 = scmp.ne.s32.totalorder %s180, %s183
    %p192 = scmp.eq.s32.totalorder %s18, 1
    %p193 = por %p191, %p192
    %p194 = scmp.ne.s32.totalorder %s183, %s184
    %p195 = scmp.eq.s32.totalorder %s18, 0
    %p196 = por %p194, %p195
    %p197 = scmp.ne.s32.totalorder %s183, %s184
    %p198 = scmp.eq.s32.totalorder %s19, 1
    %p199 = por %p197, %p198
    %p201 = scmp.ne.s32.totalorder %s184, %s200
    %p202 = scmp.eq.s32.totalorder %s19, 0
    %p203 = por %p201, %p202
    %p204 = scmp.le.s32.totalorder 1, %s13
    %p205 = scmp.lt.s32.totalorder %s13, 3
    %p206 = pnand %p204, %p205
    %p207 = pneg %p206
    // Predicated region
    $region9: #{fwd.1} parent=5 // pred_check
      _
    $region10: #{fwd.1} parent=5 // pred_check_branch
      %209 = sbr.rel (%p206) target = $region12
    $region11: #{fwd.1} parent=5 // pred_region
      %s210 = ssub.s32 %s13, 1
      // Predicated region
      $region13: #{fwd.1} parent=11 // pred_check
        %p211 = pneg %p86
      $region14: #{fwd.1} parent=11 // pred_check_branch
        %213 = sbr.rel (%p211) target = $region16
      $region15: #{fwd.1} parent=11 // pred_region
        _
      $region16: #{fwd.1} parent=11 // pred_fallthru
        _
      // Predicated region
      $region17: #{fwd.1} parent=11 // pred_check
        %p214 = pneg %p107
      $region18: #{fwd.1} parent=11 // pred_check_branch
        %216 = sbr.rel (%p214) target = $region20
      $region19: #{fwd.1} parent=11 // pred_region
        _
      $region20: #{fwd.1} parent=11 // pred_fallthru
        _
      // Predicated region
      $region21: #{fwd.1} parent=11 // pred_check
        %p217 = pneg %p128
      $region22: #{fwd.1} parent=11 // pred_check_branch
        %219 = sbr.rel (%p217) target = $region24
      $region23: #{fwd.1} parent=11 // pred_region
        _
      $region24: #{fwd.1} parent=11 // pred_fallthru
        _
      // Predicated region
      $region25: #{fwd.1} parent=11 // pred_check
        %p220 = pneg %p149
      $region26: #{fwd.1} parent=11 // pred_check_branch
        %222 = sbr.rel (%p220) target = $region28
      $region27: #{fwd.1} parent=11 // pred_region
        _
      $region28: #{fwd.1} parent=11 // pred_fallthru
        _
      // Predicated region
      $region29: #{fwd.1} parent=11 // pred_check
        %p223 = pneg %p170
      $region30: #{fwd.1} parent=11 // pred_check_branch
        %225 = sbr.rel (%p223) target = $region32
      $region31: #{fwd.1} parent=11 // pred_region
        _
      $region32: #{fwd.1} parent=11 // pred_fallthru
        _
    $region12: #{fwd.1} parent=5 // pred_fallthru
      _
    %p226 = scmp.lt.s32.totalorder %s13, 2
    // Predicated region
    $region33: #{fwd.1} parent=5 // pred_check
      %p227 = pneg %p226
    $region34: #{fwd.1} parent=5 // pred_check_branch
      %229 = sbr.rel (%p227) target = $region36
    $region35: #{fwd.1} parent=5 // pred_region
      // Predicated region
      $region37: #{fwd.1} parent=35 // pred_check
        %p230 = pneg %p33
      $region38: #{fwd.1} parent=35 // pred_check_branch
        %232 = sbr.rel (%p230) target = $region40
      $region39: #{fwd.1} parent=35 // pred_region
        %p233 = scmp.lt.s32.totalorder %s13, 1
        %s234 = scalar_select %p233, %s13, 1
        %s235 = smul.addr %s234, 3
        %s236 = smul.addr %s235, 8
        %s237 = scalar_lea.vmem %s0, %s236
      $region40: #{fwd.1} parent=35 // pred_fallthru
        _
      // Predicated region
      $region41: #{fwd.1} parent=35 // pred_check
        %p238 = pneg %p59
      $region42: #{fwd.1} parent=35 // pred_check_branch
        %240 = sbr.rel (%p238) target = $region44
      $region43: #{fwd.1} parent=35 // pred_region
        %p241 = scmp.lt.s32.totalorder %s13, 1
        %s242 = scalar_select %p241, %s13, 1
        %s243 = smul.addr %s242, 3
        %s244 = smul.addr %s243, 8
        %s245 = scalar_lea.vmem %s1, %s244
      $region44: #{fwd.1} parent=35 // pred_fallthru
        _
    $region36: #{fwd.1} parent=5 // pred_fallthru
      _
    %p246 = scmp.le.s32.totalorder 1, %s13
    %p247 = scmp.lt.s32.totalorder %s13, 3
    %p248 = pnand %p246, %p247
    %p249 = pneg %p248
    // Predicated region
    $region45: #{fwd.1} parent=5 // pred_check
      _
    $region46: #{fwd.1} parent=5 // pred_check_branch
      %251 = sbr.rel (%p248) target = $region48
    $region47: #{fwd.1} parent=5 // pred_region
      %s252 = ssub.s32 %s13, 1
      %p253 = scmp.lt.s32.totalorder %s18, 1
      %s254 = scalar_select %p253, %s18, 1
      %s255 = smul.addr %s254, 3
      %s256 = smul.addr %s255, 8
      %s257 = scalar_lea.vmem %s0, %s256
      %p258 = pneg %p39
      %p259 = pneg %p36
      %p260 = scmp.lt.s32.totalorder %s18, 1
      %s261 = scalar_select %p260, %s18, 1
      %s262 = smul.addr %s261, 3
      %s263 = smul.addr %s262, 8
      %s264 = scalar_lea.vmem %s1, %s263
      %p265 = pneg %p65
      %p266 = pneg %p62
      %p267 = pneg %p86
      %p268 = pneg %p83
      %p269 = pneg %p107
      %p270 = pneg %p104
      %p271 = pneg %p128
      %p272 = pneg %p125
      %p273 = pneg %p149
      %p274 = pneg %p146
      %p275 = pneg %p170
      %p276 = pneg %p167
      %p277 = pneg %p196
      %p278 = pneg %p193
      %p279 = scmp.lt.s32.totalorder %s18, 1
      %s280 = scalar_select %p279, %s18, 1
      %s281 = smul.addr %s280, 3
      %s282 = smul.addr %s281, 8
      %s283 = scalar_lea.vmem %s7, %s282
      %p284 = scmp.lt.s32.totalorder %s18, 1
      %s285 = scalar_select %p284, %s18, 1
      %s286 = smul.addr %s285, 3
      %s287 = smul.addr %s286, 8
      %s288 = scalar_lea.vmem %s0, %s287
      %p289 = scmp.lt.s32.totalorder %s18, 1
      %s290 = scalar_select %p289, %s18, 1
      %s291 = smul.addr %s290, 3
      %s292 = smul.addr %s291, 8
      %s293 = scalar_lea.vmem %s1, %s292
      %p294 = scmp.lt.s32.totalorder %s18, 1
      %s295 = scalar_select %p294, %s18, 1
      %s296 = smul.addr %s295, 3
      %s297 = smul.addr %s296, 8
      %s298 = scalar_lea.vmem %s7, %s297
      %v300 = vld [vmem:[%s288] sm:$0xff]
      %v301 = vld [vmem:[%s288 + $0x8] sm:$0xff]
      %v302 = vld [vmem:[%s288 + $0x10] sm:$0xff]
      %v303 = vld [vmem:[%s293] sm:$0xff]
      %v304 = vld [vmem:[%s293 + $0x8] sm:$0xff]
      %v305 = vld [vmem:[%s293 + $0x10] sm:$0xff]
      %309 = vrot.lane.b32.xlu0 %v300, 127
      %v310 = vpop.permute.xlu0 %309
      %311 = vrot.lane.b32.xlu0 %v301, 127
      %v312 = vpop.permute.xlu0 %311
      %313 = vrot.lane.b32.xlu0 %v302, 127
      %v314 = vpop.permute.xlu0 %313
      %vm315 = vcmask 1039360
      %v316 = vsel %vm315, %v310, %v312
      %v317 = vsel %vm315, %v312, %v314
      %321 = vrot.lane.b32.xlu0 %v300, 126
      %v322 = vpop.permute.xlu0 %321
      %323 = vrot.lane.b32.xlu0 %v301, 126
      %v324 = vpop.permute.xlu0 %323
      %325 = vrot.lane.b32.xlu0 %v302, 126
      %v326 = vpop.permute.xlu0 %325
      %vm327 = vcmask 1031168
      %v328 = vsel %vm327, %v322, %v324
      %v329 = vsel %vm327, %v324, %v326
      %333 = vrot.lane.b32.xlu0 %v300, 110
      %v334 = vpop.permute.xlu0 %333
      %335 = vrot.lane.b32.xlu0 %v301, 110
      %v336 = vpop.permute.xlu0 %335
      %337 = vrot.lane.b32.xlu0 %v302, 110
      %v338 = vpop.permute.xlu0 %337
      %vm339 = vcmask 900096
      %v340 = vsel %vm339, %v334, %v336
      %v341 = vsel %vm339, %v336, %v338
      %345 = vrot.lane.b32.xlu0 %v300, 109
      %v346 = vpop.permute.xlu0 %345
      %347 = vrot.lane.b32.xlu0 %v301, 109
      %v348 = vpop.permute.xlu0 %347
      %349 = vrot.lane.b32.xlu0 %v302, 109
      %v350 = vpop.permute.xlu0 %349
      %vm351 = vcmask 891904
      %v352 = vsel %vm351, %v346, %v348
      %v353 = vsel %vm351, %v348, %v350
      %357 = vrot.lane.b32.xlu0 %v300, 108
      %v358 = vpop.permute.xlu0 %357
      %359 = vrot.lane.b32.xlu0 %v301, 108
      %v360 = vpop.permute.xlu0 %359
      %361 = vrot.lane.b32.xlu0 %v302, 108
      %v362 = vpop.permute.xlu0 %361
      %vm363 = vcmask 883712
      %v364 = vsel %vm363, %v358, %v360
      %v365 = vsel %vm363, %v360, %v362
      %369 = vrot.lane.b32.xlu0 %v300, 92
      %v370 = vpop.permute.xlu0 %369
      %371 = vrot.lane.b32.xlu0 %v301, 92
      %v372 = vpop.permute.xlu0 %371
      %373 = vrot.lane.b32.xlu0 %v302, 92
      %v374 = vpop.permute.xlu0 %373
      %vm375 = vcmask 752640
      %v376 = vsel %vm375, %v370, %v372
      %v377 = vsel %vm375, %v372, %v374
      %381 = vrot.lane.b32.xlu0 %v300, 91
      %v382 = vpop.permute.xlu0 %381
      %383 = vrot.lane.b32.xlu0 %v301, 91
      %v384 = vpop.permute.xlu0 %383
      %385 = vrot.lane.b32.xlu0 %v302, 91
      %v386 = vpop.permute.xlu0 %385
      %vm387 = vcmask 744448
      %v388 = vsel %vm387, %v382, %v384
      %v389 = vsel %vm387, %v384, %v386
      %393 = vrot.lane.b32.xlu0 %v300, 90
      %v394 = vpop.permute.xlu0 %393
      %395 = vrot.lane.b32.xlu0 %v301, 90
      %v396 = vpop.permute.xlu0 %395
      %397 = vrot.lane.b32.xlu0 %v302, 90
      %v398 = vpop.permute.xlu0 %397
      %vm399 = vcmask 736256
      %v400 = vsel %vm399, %v394, %v396
      %v401 = vsel %vm399, %v396, %v398
      %v405 = vpack.c.bf16 %v316, %v300
      %v406 = vpack.c.bf16 %v317, %v301
      %v407 = vpack.c.bf16 %v314, %v302
      %v408 = vpack.c.bf16 %v340, %v328
      %v409 = vpack.c.bf16 %v341, %v329
      %v410 = vpack.c.bf16 %v338, %v326
      %v411 = vpack.c.bf16 %v364, %v352
      %v412 = vpack.c.bf16 %v365, %v353
      %v413 = vpack.c.bf16 %v362, %v350
      %v414 = vpack.c.bf16 %v388, %v376
      %v415 = vpack.c.bf16 %v389, %v377
      %v416 = vpack.c.bf16 %v386, %v374
      %v417 = vpack.c.bf16 %v400, %v400
      %v418 = vpack.c.bf16 %v401, %v401
      %v419 = vpack.c.bf16 %v398, %v398
      %423 = vrot.lane.b32.xlu0 %v303, 127
      %v424 = vpop.permute.xlu0 %423
      %425 = vrot.lane.b32.xlu0 %v304, 127
      %v426 = vpop.permute.xlu0 %425
      %427 = vrot.lane.b32.xlu0 %v305, 127
      %v428 = vpop.permute.xlu0 %427
      %v429 = vsel %vm315, %v424, %v426
      %v430 = vsel %vm315, %v426, %v428
      %434 = vrot.lane.b32.xlu0 %v303, 126
      %v435 = vpop.permute.xlu0 %434
      %436 = vrot.lane.b32.xlu0 %v304, 126
      %v437 = vpop.permute.xlu0 %436
      %438 = vrot.lane.b32.xlu0 %v305, 126
      %v439 = vpop.permute.xlu0 %438
      %v440 = vsel %vm327, %v435, %v437
      %v441 = vsel %vm327, %v437, %v439
      %445 = vrot.lane.b32.xlu0 %v303, 110
      %v446 = vpop.permute.xlu0 %445
      %447 = vrot.lane.b32.xlu0 %v304, 110
      %v448 = vpop.permute.xlu0 %447
      %449 = vrot.lane.b32.xlu0 %v305, 110
      %v450 = vpop.permute.xlu0 %449
      %v451 = vsel %vm339, %v446, %v448
      %v452 = vsel %vm339, %v448, %v450
      %456 = vrot.lane.b32.xlu0 %v303, 109
      %v457 = vpop.permute.xlu0 %456
      %458 = vrot.lane.b32.xlu0 %v304, 109
      %v459 = vpop.permute.xlu0 %458
      %460 = vrot.lane.b32.xlu0 %v305, 109
      %v461 = vpop.permute.xlu0 %460
      %v462 = vsel %vm351, %v457, %v459
      %v463 = vsel %vm351, %v459, %v461
      %467 = vrot.lane.b32.xlu0 %v303, 108
      %v468 = vpop.permute.xlu0 %467
      %469 = vrot.lane.b32.xlu0 %v304, 108
      %v470 = vpop.permute.xlu0 %469
      %471 = vrot.lane.b32.xlu0 %v305, 108
      %v472 = vpop.permute.xlu0 %471
      %v473 = vsel %vm363, %v468, %v470
      %v474 = vsel %vm363, %v470, %v472
      %478 = vrot.lane.b32.xlu0 %v303, 92
      %v479 = vpop.permute.xlu0 %478
      %480 = vrot.lane.b32.xlu0 %v304, 92
      %v481 = vpop.permute.xlu0 %480
      %482 = vrot.lane.b32.xlu0 %v305, 92
      %v483 = vpop.permute.xlu0 %482
      %v484 = vsel %vm375, %v479, %v481
      %v485 = vsel %vm375, %v481, %v483
      %489 = vrot.lane.b32.xlu0 %v303, 91
      %v490 = vpop.permute.xlu0 %489
      %491 = vrot.lane.b32.xlu0 %v304, 91
      %v492 = vpop.permute.xlu0 %491
      %493 = vrot.lane.b32.xlu0 %v305, 91
      %v494 = vpop.permute.xlu0 %493
      %v495 = vsel %vm387, %v490, %v492
      %v496 = vsel %vm387, %v492, %v494
      %500 = vrot.lane.b32.xlu0 %v303, 90
      %v501 = vpop.permute.xlu0 %500
      %502 = vrot.lane.b32.xlu0 %v304, 90
      %v503 = vpop.permute.xlu0 %502
      %504 = vrot.lane.b32.xlu0 %v305, 90
      %v505 = vpop.permute.xlu0 %504
      %v506 = vsel %vm399, %v501, %v503
      %v507 = vsel %vm399, %v503, %v505
      %v511 = vpack.c.bf16 %v429, %v303
      %v512 = vpack.c.bf16 %v430, %v304
      %v513 = vpack.c.bf16 %v428, %v305
      %v514 = vpack.c.bf16 %v451, %v440
      %v515 = vpack.c.bf16 %v452, %v441
      %v516 = vpack.c.bf16 %v450, %v439
      %v517 = vpack.c.bf16 %v473, %v462
      %v518 = vpack.c.bf16 %v474, %v463
      %v519 = vpack.c.bf16 %v472, %v461
      %v520 = vpack.c.bf16 %v495, %v484
      %v521 = vpack.c.bf16 %v496, %v485
      %v522 = vpack.c.bf16 %v494, %v483
      %v523 = vpack.c.bf16 %v506, %v506
      %v524 = vpack.c.bf16 %v507, %v507
      %v525 = vpack.c.bf16 %v505, %v505
      %v526 = vld [vmem:[%s2] sm:$0xf]
      %v527 = vld [vmem:[%s2 + $0x4] sm:$0xf]
      %v528 = vld [vmem:[%s2 + $0x8] sm:$0xf]
      %v532 = vunpack.c.l.b16 %v526
      %v533 = vunpack.c.l.b16 %v527
      %v534 = vunpack.c.l.b16 %v528
      %v535 = vpack.c.b16 %v533, %v532
      %v536 = vpack.c.b16 %v534, %v534
      %vm537 = vcmask 588800
      %v539 = vsel %vm537, %v535, 0
      %v542 = vsel %vm537, %v536, 0
      %vm544 = vcmask 1043456
      %v546 = vsel %vm544, %v417, 0
      %v549 = vsel %vm544, %v418, 0
      %v552 = vsel %vm544, %v419, 0
      %554 = vmatprep.subr.bf16.mxu0 %v406
      %555 = vmatpush1.bf16.msra.mxu0 %v405
      %556 = vmatprep.subr.bf16.mxu0 %v409
      %557 = vmatpush1.bf16.msra.mxu0 %v408
      %558 = vmatprep.subr.bf16.mxu0 %v412
      %559 = vmatpush1.bf16.msra.mxu0 %v411
      %560 = vmatprep.subr.bf16.mxu0 %v415
      %561 = vmatpush1.bf16.msra.mxu0 %v414
      %562 = vmatprep.subr.bf16.mxu0 %v549
      %563 = vmatpush1.bf16.msra.mxu0 %v546
      %564 = vmatprep.subr.bf16.mxu0 0
      %565 = vmatpush1.bf16.msra.mxu0 0
      %566 = vmatprep.subr.bf16.mxu0 0
      %567 = vmatpush1.bf16.msra.mxu0 0
      %568 = vmatprep.subr.bf16.mxu0 0
      %569 = vmatpush1.bf16.msra.mxu0 0
      %570 = vmatprep.subr.bf16.mxu0 0
      %571 = vmatpush1.bf16.msra.mxu0 0
      %572 = vmatprep.subr.bf16.mxu0 0
      %573 = vmatpush1.bf16.msra.mxu0 0
      %574 = vmatprep.subr.bf16.mxu0 0
      %575 = vmatpush1.bf16.msra.mxu0 0
      %576 = vmatprep.subr.bf16.mxu0 0
      %577 = vmatpush1.bf16.msra.mxu0 0
      %578 = vmatprep.subr.bf16.mxu0 0
      %579 = vmatpush1.bf16.msra.mxu0 0
      %580 = vmatprep.subr.bf16.mxu0 0
      %581 = vmatpush1.bf16.msra.mxu0 0
      %582 = vmatprep.subr.bf16.mxu0 0
      %583 = vmatpush1.bf16.msra.mxu0 0
      %584 = vmatprep.subr.bf16.mxu0 0
      %585 = vmatpush1.bf16.msra.mxu0 0
      %586 = vmatprep.mubr.bf16.mxu0 0
      %587 = vmatmul.mubr.bf16.gmra.mrb[0].mxu0 %v539
      %v588 = vpop.f32.mrb[0].mxu0
      %v589 = vadd.f32 0.0, %v588
      %v590 = vpop.f32.mrb[0].mxu0
      %v591 = vadd.f32 0.0, %v590
      %v592 = vpop.f32.mrb[0].mxu0
      %v593 = vadd.f32 0.0, %v592
      %v594 = vpop.f32.mrb[0].mxu0
      %v595 = vadd.f32 0.0, %v594
      %596 = vmatprep.mubr.bf16.mxu0 0
      %597 = vmatmul.mubr.bf16.gmra.mrb[0].mxu0 %v542
      %v598 = vpop.f32.mrb[0].mxu0
      %v599 = vadd.f32 0.0, %v598
      %v600 = vpop.f32.mrb[0].mxu0
      %v601 = vadd.f32 0.0, %v600
      %v602 = vpop.f32.mrb[0].mxu0
      %v603 = vpop.f32.mrb[0].mxu0
      %604 = vdwg.mxu0
      %605 = vmatprep.subr.bf16.mxu0 0
      %606 = vmatpush1.bf16.msra.mxu0 %v407
      %607 = vmatprep.subr.bf16.mxu0 0
      %608 = vmatpush1.bf16.msra.mxu0 %v410
      %609 = vmatprep.subr.bf16.mxu0 0
      %610 = vmatpush1.bf16.msra.mxu0 %v413
      %611 = vmatprep.subr.bf16.mxu0 0
      %612 = vmatpush1.bf16.msra.mxu0 %v416
      %613 = vmatprep.subr.bf16.mxu0 0
      %614 = vmatpush1.bf16.msra.mxu0 %v552
      %615 = vmatprep.subr.bf16.mxu0 0
      %616 = vmatpush1.bf16.msra.mxu0 0
      %617 = vmatprep.subr.bf16.mxu0 0
      %618 = vmatpush1.bf16.msra.mxu0 0
      %619 = vmatprep.subr.bf16.mxu0 0
      %620 = vmatpush1.bf16.msra.mxu0 0
      %621 = vmatprep.subr.bf16.mxu0 0
      %622 = vmatpush1.bf16.msra.mxu0 0
      %623 = vmatprep.subr.bf16.mxu0 0
      %624 = vmatpush1.bf16.msra.mxu0 0
      %625 = vmatprep.subr.bf16.mxu0 0
      %626 = vmatpush1.bf16.msra.mxu0 0
      %627 = vmatprep.subr.bf16.mxu0 0
      %628 = vmatpush1.bf16.msra.mxu0 0
      %629 = vmatprep.subr.bf16.mxu0 0
      %630 = vmatpush1.bf16.msra.mxu0 0
      %631 = vmatprep.subr.bf16.mxu0 0
      %632 = vmatpush1.bf16.msra.mxu0 0
      %633 = vmatprep.subr.bf16.mxu0 0
      %634 = vmatpush1.bf16.msra.mxu0 0
      %635 = vmatprep.subr.bf16.mxu0 0
      %636 = vmatpush1.bf16.msra.mxu0 0
      %637 = vmatprep.mubr.bf16.mxu0 0
      %638 = vmatmul.mubr.bf16.gmra.mrb[0].mxu0 %v539
      %v639 = vpop.f32.mrb[0].mxu0
      %v640 = vadd.f32 0.0, %v639
      %v641 = vpop.f32.mrb[0].mxu0
      %v642 = vpop.f32.mrb[0].mxu0
      %v643 = vadd.f32 0.0, %v642
      %v644 = vpop.f32.mrb[0].mxu0
      %645 = vmatprep.mubr.bf16.mxu0 0
      %646 = vmatmul.mubr.bf16.gmra.mrb[0].mxu0 %v542
      %v647 = vpop.f32.mrb[0].mxu0
      %v648 = vadd.f32 0.0, %v647
      %v649 = vpop.f32.mrb[0].mxu0
      %v650 = vpop.f32.mrb[0].mxu0
      %v651 = vpop.f32.mrb[0].mxu0
      %652 = vdwg.mxu0
      %v653 = vld [vmem:[%s3] sm:$0xf]
      %v654 = vld [vmem:[%s3 + $0x4] sm:$0xf]
      %v657 = vunpack.c.l.b16 %v653
      %v658 = vunpack.c.l.b16 %v654
      %v659 = vpack.c.b16 %v658, %v657
      %v661 = vsel %vm537, %v659, 0
      %v664 = vsel %vm544, %v523, 0
      %v667 = vsel %vm544, %v524, 0
      %v670 = vsel %vm544, %v525, 0
      %672 = vmatprep.subr.bf16.mxu0 %v512
      %673 = vmatpush1.bf16.msra.mxu0 %v511
      %674 = vmatprep.subr.bf16.mxu0 %v515
      %675 = vmatpush1.bf16.msra.mxu0 %v514
      %676 = vmatprep.subr.bf16.mxu0 %v518
      %677 = vmatpush1.bf16.msra.mxu0 %v517
      %678 = vmatprep.subr.bf16.mxu0 %v521
      %679 = vmatpush1.bf16.msra.mxu0 %v520
      %680 = vmatprep.subr.bf16.mxu0 %v667
      %681 = vmatpush1.bf16.msra.mxu0 %v664
      %682 = vmatprep.subr.bf16.mxu0 0
      %683 = vmatpush1.bf16.msra.mxu0 0
      %684 = vmatprep.subr.bf16.mxu0 0
      %685 = vmatpush1.bf16.msra.mxu0 0
      %686 = vmatprep.subr.bf16.mxu0 0
      %687 = vmatpush1.bf16.msra.mxu0 0
      %688 = vmatprep.subr.bf16.mxu0 0
      %689 = vmatpush1.bf16.msra.mxu0 0
      %690 = vmatprep.subr.bf16.mxu0 0
      %691 = vmatpush1.bf16.msra.mxu0 0
      %692 = vmatprep.subr.bf16.mxu0 0
      %693 = vmatpush1.bf16.msra.mxu0 0
      %694 = vmatprep.subr.bf16.mxu0 0
      %695 = vmatpush1.bf16.msra.mxu0 0
      %696 = vmatprep.subr.bf16.mxu0 0
      %697 = vmatpush1.bf16.msra.mxu0 0
      %698 = vmatprep.subr.bf16.mxu0 0
      %699 = vmatpush1.bf16.msra.mxu0 0
      %700 = vmatprep.subr.bf16.mxu0 0
      %701 = vmatpush1.bf16.msra.mxu0 0
      %702 = vmatprep.subr.bf16.mxu0 0
      %703 = vmatpush1.bf16.msra.mxu0 0
      %704 = vmatprep.mubr.bf16.mxu0 0
      %705 = vmatmul.mubr.bf16.gmra.mrb[0].mxu0 %v661
      %v706 = vpop.f32.mrb[0].mxu0
      %v707 = vadd.f32 0.0, %v706
      %v708 = vpop.f32.mrb[0].mxu0
      %v709 = vadd.f32 0.0, %v708
      %v710 = vpop.f32.mrb[0].mxu0
      %v711 = vadd.f32 0.0, %v710
      %v712 = vpop.f32.mrb[0].mxu0
      %v713 = vadd.f32 0.0, %v712
      %714 = vdwg.mxu0
      %715 = vmatprep.subr.bf16.mxu0 0
      %716 = vmatpush1.bf16.msra.mxu0 %v513
      %717 = vmatprep.subr.bf16.mxu0 0
      %718 = vmatpush1.bf16.msra.mxu0 %v516
      %719 = vmatprep.subr.bf16.mxu0 0
      %720 = vmatpush1.bf16.msra.mxu0 %v519
      %721 = vmatprep.subr.bf16.mxu0 0
      %722 = vmatpush1.bf16.msra.mxu0 %v522
      %723 = vmatprep.subr.bf16.mxu0 0
      %724 = vmatpush1.bf16.msra.mxu0 %v670
      %725 = vmatprep.subr.bf16.mxu0 0
      %726 = vmatpush1.bf16.msra.mxu0 0
      %727 = vmatprep.subr.bf16.mxu0 0
      %728 = vmatpush1.bf16.msra.mxu0 0
      %729 = vmatprep.subr.bf16.mxu0 0
      %730 = vmatpush1.bf16.msra.mxu0 0
      %731 = vmatprep.subr.bf16.mxu0 0
      %732 = vmatpush1.bf16.msra.mxu0 0
      %733 = vmatprep.subr.bf16.mxu0 0
      %734 = vmatpush1.bf16.msra.mxu0 0
      %735 = vmatprep.subr.bf16.mxu0 0
      %736 = vmatpush1.bf16.msra.mxu0 0
      %737 = vmatprep.subr.bf16.mxu0 0
      %738 = vmatpush1.bf16.msra.mxu0 0
      %739 = vmatprep.subr.bf16.mxu0 0
      %740 = vmatpush1.bf16.msra.mxu0 0
      %741 = vmatprep.subr.bf16.mxu0 0
      %742 = vmatpush1.bf16.msra.mxu0 0
      %743 = vmatprep.subr.bf16.mxu0 0
      %744 = vmatpush1.bf16.msra.mxu0 0
      %745 = vmatprep.subr.bf16.mxu0 0
      %746 = vmatpush1.bf16.msra.mxu0 0
      %747 = vmatprep.mubr.bf16.mxu0 0
      %748 = vmatmul.mubr.bf16.gmra.mrb[0].mxu0 %v661
      %v749 = vpop.f32.mrb[0].mxu0
      %v750 = vadd.f32 0.0, %v749
      %v751 = vpop.f32.mrb[0].mxu0
      %v752 = vpop.f32.mrb[0].mxu0
      %v753 = vadd.f32 0.0, %v752
      %v754 = vpop.f32.mrb[0].mxu0
      %755 = vdwg.mxu0
      %v756 = vadd.f32 %v589, %v707
      %v757 = vadd.f32 %v591, %v709
      %v758 = vadd.f32 %v640, %v750
      %v759 = vadd.f32 %v593, %v711
      %v760 = vadd.f32 %v595, %v713
      %v761 = vadd.f32 %v643, %v753
      %v762 = vld [vmem:[%s5] sm:$0xff]
      %v763 = vld [vmem:[%s5 + $0x8] sm:$0xff]
      %765 = vset.pattern.permute.xlu0 0
      %766 = vperm.xlu0 %765, %v762
      %v767 = vpop.permute.xlu0 %766
      %770 = vset.pattern.permute.xlu0 0
      %771 = vperm.xlu0 %770, %v763
      %v772 = vpop.permute.xlu0 %771
      %v774 = vadd.f32 %v756, %v767
      %v775 = vadd.f32 %v757, %v767
      %v776 = vadd.f32 %v758, %v767
      %v777 = vadd.f32 %v759, %v772
      %v778 = vadd.f32 %v760, %v772
      %v779 = vadd.f32 %v761, %v772
      %v780 = vxor.u32 %v774, 2147483648
      %v781 = vxor.u32 %v775, 2147483648
      %v782 = vxor.u32 %v776, 2147483648
      %v783 = vxor.u32 %v777, 2147483648
      %v784 = vxor.u32 %v778, 2147483648
      %v785 = vxor.u32 %v779, 2147483648
      %v786 = vmul.f32 %v780, 1.442695
      %v787 = vpow.pop %v786
      %v788 = vmul.f32 %v781, 1.442695
      %v789 = vpow.pop %v788
      %v790 = vmul.f32 %v782, 1.442695
      %v791 = vpow.pop %v790
      %v792 = vmul.f32 %v783, 1.442695
      %v793 = vpow.pop %v792
      %v794 = vmul.f32 %v784, 1.442695
      %v795 = vpow.pop %v794
      %v796 = vmul.f32 %v785, 1.442695
      %v797 = vpow.pop %v796
      %v798 = vadd.f32 %v787, 1.0
      %v799 = vadd.f32 %v789, 1.0
      %v800 = vadd.f32 %v791, 1.0
      %v801 = vadd.f32 %v793, 1.0
      %v802 = vadd.f32 %v795, 1.0
      %v803 = vadd.f32 %v797, 1.0
      %v804 = vrcp.pop %v798
      %v805 = vmul.f32 1.0, %v804
      %v806 = vrcp.pop %v799
      %v807 = vmul.f32 1.0, %v806
      %v808 = vrcp.pop %v800
      %v809 = vmul.f32 1.0, %v808
      %v810 = vrcp.pop %v801
      %v811 = vmul.f32 1.0, %v810
      %v812 = vrcp.pop %v802
      %v813 = vmul.f32 1.0, %v812
      %v814 = vrcp.pop %v803
      %v815 = vmul.f32 1.0, %v814
      %819 = vrot.lane.b32.xlu0 %v811, 19
      %v820 = vpop.permute.xlu0 %819
      %821 = vrot.lane.b32.xlu0 %v813, 19
      %v822 = vpop.permute.xlu0 %821
      %823 = vrot.lane.b32.xlu0 %v815, 19
      %v824 = vpop.permute.xlu0 %823
      %vm825 = vcmask 154624
      %v826 = vsel %vm825, %v820, %v822
      %v827 = vsel %vm825, %v822, %v824
      %v831 = vmul.f32 %v303, %v820
      %v832 = vmul.f32 %v304, %v826
      %v833 = vmul.f32 %v305, %v827
      %v834 = vsel %vm825, 0.0, %v831
      %vm835 = vcmask 416768
      %v836 = vsel %vm835, %v833, 0.0
      %840 = vrot.lane.b32.xlu0 %v834, 127
      %v841 = vpop.permute.xlu0 %840
      %842 = vrot.lane.b32.xlu0 %v832, 127
      %v843 = vpop.permute.xlu0 %842
      %844 = vrot.lane.b32.xlu0 %v836, 127
      %v845 = vpop.permute.xlu0 %844
      %v846 = vsel %vm315, %v841, %v843
      %v847 = vsel %vm315, %v843, %v845
      %851 = vrot.lane.b32.xlu0 %v834, 126
      %v852 = vpop.permute.xlu0 %851
      %853 = vrot.lane.b32.xlu0 %v832, 126
      %v854 = vpop.permute.xlu0 %853
      %855 = vrot.lane.b32.xlu0 %v836, 126
      %v856 = vpop.permute.xlu0 %855
      %v857 = vsel %vm327, %v852, %v854
      %v858 = vsel %vm327, %v854, %v856
      %862 = vrot.lane.b32.xlu0 %v834, 110
      %v863 = vpop.permute.xlu0 %862
      %864 = vrot.lane.b32.xlu0 %v832, 110
      %v865 = vpop.permute.xlu0 %864
      %866 = vrot.lane.b32.xlu0 %v836, 110
      %v867 = vpop.permute.xlu0 %866
      %v868 = vsel %vm339, %v863, %v865
      %v869 = vsel %vm339, %v865, %v867
      %873 = vrot.lane.b32.xlu0 %v834, 109
      %v874 = vpop.permute.xlu0 %873
      %875 = vrot.lane.b32.xlu0 %v832, 109
      %v876 = vpop.permute.xlu0 %875
      %877 = vrot.lane.b32.xlu0 %v836, 109
      %v878 = vpop.permute.xlu0 %877
      %v879 = vsel %vm351, %v874, %v876
      %v880 = vsel %vm351, %v876, %v878
      %884 = vrot.lane.b32.xlu0 %v834, 108
      %v885 = vpop.permute.xlu0 %884
      %886 = vrot.lane.b32.xlu0 %v832, 108
      %v887 = vpop.permute.xlu0 %886
      %888 = vrot.lane.b32.xlu0 %v836, 108
      %v889 = vpop.permute.xlu0 %888
      %v890 = vsel %vm363, %v885, %v887
      %v891 = vsel %vm363, %v887, %v889
      %895 = vrot.lane.b32.xlu0 %v834, 92
      %v896 = vpop.permute.xlu0 %895
      %897 = vrot.lane.b32.xlu0 %v832, 92
      %v898 = vpop.permute.xlu0 %897
      %899 = vrot.lane.b32.xlu0 %v836, 92
      %v900 = vpop.permute.xlu0 %899
      %v901 = vsel %vm375, %v896, %v898
      %v902 = vsel %vm375, %v898, %v900
      %906 = vrot.lane.b32.xlu0 %v834, 91
      %v907 = vpop.permute.xlu0 %906
      %908 = vrot.lane.b32.xlu0 %v832, 91
      %v909 = vpop.permute.xlu0 %908
      %910 = vrot.lane.b32.xlu0 %v836, 91
      %v911 = vpop.permute.xlu0 %910
      %v912 = vsel %vm387, %v907, %v909
      %v913 = vsel %vm387, %v909, %v911
      %917 = vrot.lane.b32.xlu0 %v834, 90
      %v918 = vpop.permute.xlu0 %917
      %919 = vrot.lane.b32.xlu0 %v832, 90
      %v920 = vpop.permute.xlu0 %919
      %921 = vrot.lane.b32.xlu0 %v836, 90
      %v922 = vpop.permute.xlu0 %921
      %v923 = vsel %vm399, %v918, %v920
      %v924 = vsel %vm399, %v920, %v922
      %v928 = vpack.c.bf16 %v846, %v834
      %v929 = vpack.c.bf16 %v847, %v832
      %v930 = vpack.c.bf16 %v845, %v836
      %v931 = vpack.c.bf16 %v868, %v857
      %v932 = vpack.c.bf16 %v869, %v858
      %v933 = vpack.c.bf16 %v867, %v856
      %v934 = vpack.c.bf16 %v890, %v879
      %v935 = vpack.c.bf16 %v891, %v880
      %v936 = vpack.c.bf16 %v889, %v878
      %v937 = vpack.c.bf16 %v912, %v901
      %v938 = vpack.c.bf16 %v913, %v902
      %v939 = vpack.c.bf16 %v911, %v900
      %v940 = vpack.c.bf16 %v923, %v923
      %v941 = vpack.c.bf16 %v924, %v924
      %v942 = vpack.c.bf16 %v922, %v922
      %v943 = vld [vmem:[%s4] sm:$0xf]
      %v945 = vsel %vm537, %v943, 0
      %v948 = vsel %vm544, %v940, 0
      %v951 = vsel %vm544, %v941, 0
      %v954 = vsel %vm544, %v942, 0
      %956 = vmatprep.subr.bf16.mxu0 %v929
      %957 = vmatpush1.bf16.msra.mxu0 %v928
      %958 = vmatprep.subr.bf16.mxu0 %v932
      %959 = vmatpush1.bf16.msra.mxu0 %v931
      %960 = vmatprep.subr.bf16.mxu0 %v935
      %961 = vmatpush1.bf16.msra.mxu0 %v934
      %962 = vmatprep.subr.bf16.mxu0 %v938
      %963 = vmatpush1.bf16.msra.mxu0 %v937
      %964 = vmatprep.subr.bf16.mxu0 %v951
      %965 = vmatpush1.bf16.msra.mxu0 %v948
      %966 = vmatprep.subr.bf16.mxu0 0
      %967 = vmatpush1.bf16.msra.mxu0 0
      %968 = vmatprep.subr.bf16.mxu0 0
      %969 = vmatpush1.bf16.msra.mxu0 0
      %970 = vmatprep.subr.bf16.mxu0 0
      %971 = vmatpush1.bf16.msra.mxu0 0
      %972 = vmatprep.subr.bf16.mxu0 0
      %973 = vmatpush1.bf16.msra.mxu0 0
      %974 = vmatprep.subr.bf16.mxu0 0
      %975 = vmatpush1.bf16.msra.mxu0 0
      %976 = vmatprep.subr.bf16.mxu0 0
      %977 = vmatpush1.bf16.msra.mxu0 0
      %978 = vmatprep.subr.bf16.mxu0 0
      %979 = vmatpush1.bf16.msra.mxu0 0
      %980 = vmatprep.subr.bf16.mxu0 0
      %981 = vmatpush1.bf16.msra.mxu0 0
      %982 = vmatprep.subr.bf16.mxu0 0
      %983 = vmatpush1.bf16.msra.mxu0 0
      %984 = vmatprep.subr.bf16.mxu0 0
      %985 = vmatpush1.bf16.msra.mxu0 0
      %986 = vmatprep.subr.bf16.mxu0 0
      %987 = vmatpush1.bf16.msra.mxu0 0
      %988 = vmatprep.mubr.bf16.mxu0 0
      %989 = vmatmul.mubr.bf16.gmra.mrb[0].mxu0 %v945
      %v990 = vpop.f32.mrb[0].mxu0
      %v991 = vadd.f32 0.0, %v990
      %v992 = vpop.f32.mrb[0].mxu0
      %v993 = vadd.f32 0.0, %v992
      %v994 = vpop.f32.mrb[0].mxu0
      %v995 = vpop.f32.mrb[0].mxu0
      %996 = vdwg.mxu0
      %997 = vmatprep.subr.bf16.mxu0 0
      %998 = vmatpush1.bf16.msra.mxu0 %v930
      %999 = vmatprep.subr.bf16.mxu0 0
      %1000 = vmatpush1.bf16.msra.mxu0 %v933
      %1001 = vmatprep.subr.bf16.mxu0 0
      %1002 = vmatpush1.bf16.msra.mxu0 %v936
      %1003 = vmatprep.subr.bf16.mxu0 0
      %1004 = vmatpush1.bf16.msra.mxu0 %v939
      %1005 = vmatprep.subr.bf16.mxu0 0
      %1006 = vmatpush1.bf16.msra.mxu0 %v954
      %1007 = vmatprep.subr.bf16.mxu0 0
      %1008 = vmatpush1.bf16.msra.mxu0 0
      %1009 = vmatprep.subr.bf16.mxu0 0
      %1010 = vmatpush1.bf16.msra.mxu0 0
      %1011 = vmatprep.subr.bf16.mxu0 0
      %1012 = vmatpush1.bf16.msra.mxu0 0
      %1013 = vmatprep.subr.bf16.mxu0 0
      %1014 = vmatpush1.bf16.msra.mxu0 0
      %1015 = vmatprep.subr.bf16.mxu0 0
      %1016 = vmatpush1.bf16.msra.mxu0 0
      %1017 = vmatprep.subr.bf16.mxu0 0
      %1018 = vmatpush1.bf16.msra.mxu0 0
      %1019 = vmatprep.subr.bf16.mxu0 0
      %1020 = vmatpush1.bf16.msra.mxu0 0
      %1021 = vmatprep.subr.bf16.mxu0 0
      %1022 = vmatpush1.bf16.msra.mxu0 0
      %1023 = vmatprep.subr.bf16.mxu0 0
      %1024 = vmatpush1.bf16.msra.mxu0 0
      %1025 = vmatprep.subr.bf16.mxu0 0
      %1026 = vmatpush1.bf16.msra.mxu0 0
      %1027 = vmatprep.subr.bf16.mxu0 0
      %1028 = vmatpush1.bf16.msra.mxu0 0
      %1029 = vmatprep.mubr.bf16.mxu0 0
      %1030 = vmatmul.mubr.bf16.gmra.mrb[0].mxu0 %v945
      %v1031 = vpop.f32.mrb[0].mxu0
      %v1032 = vadd.f32 0.0, %v1031
      %v1033 = vpop.f32.mrb[0].mxu0
      %v1034 = vpop.f32.mrb[0].mxu0
      %v1035 = vpop.f32.mrb[0].mxu0
      %1036 = vdwg.mxu0
      %v1037 = vadd.f32 %v599, %v991
      %v1038 = vadd.f32 %v601, %v993
      %v1039 = vadd.f32 %v648, %v1032
      %v1040 = vld [vmem:[%s6] sm:$0xff]
      %1042 = vset.pattern.permute.xlu0 0
      %1043 = vperm.xlu0 %1042, %v1040
      %v1044 = vpop.permute.xlu0 %1043
      %v1046 = vadd.f32 %v1037, %v1044
      %v1047 = vadd.f32 %v1038, %v1044
      %v1048 = vadd.f32 %v1039, %v1044
      %v1049 = vtanh.pop %v1046
      %v1050 = vtanh.pop %v1047
      %v1051 = vtanh.pop %v1048
      %v1052 = vsub.f32 1.0, %v805
      %v1053 = vsub.f32 1.0, %v807
      %v1054 = vsub.f32 1.0, %v809
      %1058 = vrot.lane.b32.xlu0 %v1052, 19
      %v1059 = vpop.permute.xlu0 %1058
      %1060 = vrot.lane.b32.xlu0 %v1053, 19
      %v1061 = vpop.permute.xlu0 %1060
      %1062 = vrot.lane.b32.xlu0 %v1054, 19
      %v1063 = vpop.permute.xlu0 %1062
      %v1064 = vsel %vm825, %v1059, %v1061
      %v1065 = vsel %vm825, %v1061, %v1063
      %v1069 = vmul.f32 %v303, %v1059
      %v1070 = vmul.f32 %v304, %v1064
      %v1071 = vmul.f32 %v305, %v1065
      %v1072 = vmul.f32 %v1049, %v805
      %v1073 = vmul.f32 %v1050, %v807
      %v1074 = vmul.f32 %v1051, %v809
      %1078 = vrot.lane.b32.xlu0 %v1072, 19
      %v1079 = vpop.permute.xlu0 %1078
      %1080 = vrot.lane.b32.xlu0 %v1073, 19
      %v1081 = vpop.permute.xlu0 %1080
      %1082 = vrot.lane.b32.xlu0 %v1074, 19
      %v1083 = vpop.permute.xlu0 %1082
      %v1084 = vsel %vm825, %v1079, %v1081
      %v1085 = vsel %vm825, %v1081, %v1083
      %v1089 = vadd.f32 %v1069, %v1079
      %v1090 = vadd.f32 %v1070, %v1084
      %v1091 = vadd.f32 %v1071, %v1085
      %1095 = vrot.lane.b32.xlu0 %v1089, 109
      %v1096 = vpop.permute.xlu0 %1095
      %1097 = vrot.lane.b32.xlu0 %v1090, 109
      %v1098 = vpop.permute.xlu0 %1097
      %1099 = vrot.lane.b32.xlu0 %v1091, 109
      %v1100 = vpop.permute.xlu0 %1099
      %v1101 = vsel %vm351, %v1096, %v1098
      %v1102 = vsel %vm351, %v1098, %v1100
      %1106 = vst [vmem:[%s298] sm:$0xff] %v1101
      %1107 = vst [vmem:[%s298 + $0x8] sm:$0xff] %v1102
      %vm1108 = vcmask 261120
      %1109 = vst.msk [vmem:[%s298 + $0x10] sm:$0xff] %vm1108, %v1100
      %p1110 = scmp.lt.s32.totalorder %s18, 1
      %s1111 = scalar_select %p1110, %s18, 1
      %s1112 = smul.addr %s1111, 3
      %s1113 = smul.addr %s1112, 8
      %s1114 = scalar_lea.vmem %s7, %s1113
      // Predicated region
      $region49: #{fwd.1} parent=47 // pred_check
        %p1115 = pneg %p193
      $region50: #{fwd.1} parent=47 // pred_check_branch
        %1117 = sbr.rel (%p1115) target = $region52
      $region51: #{fwd.1} parent=47 // pred_region
        _
      $region52: #{fwd.1} parent=47 // pred_fallthru
        _
    $region48: #{fwd.1} parent=5 // pred_fallthru
      _
    %p1118 = scmp.le.s32.totalorder 2, %s13
    // Predicated region
    $region53: #{fwd.1} parent=5 // pred_check
      %p1119 = pneg %p1118
    $region54: #{fwd.1} parent=5 // pred_check_branch
      %1121 = sbr.rel (%p1119) target = $region56
    $region55: #{fwd.1} parent=5 // pred_region
      %s1122 = ssub.s32 %s13, 2
      // Predicated region
      $region57: #{fwd.1} parent=55 // pred_check
        %p1123 = pneg %p199
      $region58: #{fwd.1} parent=55 // pred_check_branch
        %1125 = sbr.rel (%p1123) target = $region60
      $region59: #{fwd.1} parent=55 // pred_region
        %p1126 = scmp.lt.s32.totalorder %s19, 1
        %s1127 = scalar_select %p1126, %s19, 1
        %s1128 = smul.addr %s1127, 3
        %s1129 = smul.addr %s1128, 8
        %s1130 = scalar_lea.vmem %s7, %s1129
      $region60: #{fwd.1} parent=55 // pred_fallthru
        _
    $region56: #{fwd.1} parent=5 // pred_fallthru
      _
  $region6: #{fwd.1} parent=0 // loop_footer
    %s17 = sadd.s32 1, %s13
  $region7: #{fwd.1} parent=0 // loop_footer_branch
    %12 = sbr.rel target = $region3
  $region8: #{fwd.1} parent=0 // loop_exit
    _

</llo_original>
